<compile_context>
chip_gen: v6e
topology: v6e:2x2x1
jax: 0.10.0
libtpu: 0.0.40
codegen_flags: <defaults>
</compile_context>

<pallas_src>
import jax
import jax.numpy as jnp
from jax import lax
from jax.experimental import pallas as pl
from jax.experimental.pallas import tpu as pltpu


def _infonce_kernel(temp_ref, im_ref, s_ref, out_ref,
                    m_c_ref, l_c_ref, acc_r_ref, acc_d_ref):
    i = pl.program_id(0)
    n_tiles = pl.num_programs(0)
    tile_m = im_ref.shape[0]
    b = s_ref.shape[0]

    @pl.when(i == 0)
    def _init():
        m_c_ref[...] = jnp.full_like(m_c_ref, -jnp.inf)
        l_c_ref[...] = jnp.zeros_like(l_c_ref)
        acc_r_ref[...] = jnp.zeros_like(acc_r_ref)
        acc_d_ref[...] = jnp.zeros_like(acc_d_ref)

    # Fold 1/T into the small (tile_m, D) operand instead of the (tile_m, B) logits.
    inv_t = (1.0 / temp_ref[0]).astype(im_ref.dtype)
    im_t = im_ref[...] * inv_t                                   # native dtype (bf16 ok)
    s_all = s_ref[...]

    # scores[r, j] = <im_r, s_j> / T.  Contract the last dim of both operands
    # (lane-major into the MXU, no transpose/relayout); accumulate in f32.
    scores = lax.dot_general(
        im_t, s_all,
        dimension_numbers=(((1,), (1,)), ((), ())),
        preferred_element_type=jnp.float32)                      # (tile_m, B) f32

    # Diagonal ("correct class") logits for this row tile: <im_r, s_{row0+r}> / T.
    row0 = pl.multiple_of(i * tile_m, tile_m)
    s_diag = s_ref[pl.ds(row0, tile_m), :]
    diag = jnp.sum(im_t.astype(jnp.float32) * s_diag.astype(jnp.float32),
                   axis=1, keepdims=True)                        # (tile_m, 1)

    # Row-direction CE (image -> sentence): exact per-tile logsumexp (all f32).
    m_r = jnp.max(scores, axis=1, keepdims=True)                 # (tile_m, 1)
    lse_r = m_r + jnp.log(jnp.sum(jnp.exp(scores - m_r), axis=1, keepdims=True))
    acc_r_ref[...] += jnp.sum(lse_r, axis=0, keepdims=True)      # (1, 1)
    acc_d_ref[...] += jnp.sum(diag, axis=0, keepdims=True)       # (1, 1)

    # Column-direction CE (sentence -> image): online logsumexp across row tiles.
    # (If the sublane-direction reductions ever saturate the XLU, the sum below
    #  could be moved onto the otherwise-idle MXU as ones(1, tile_m) @ exp(...).)
    m_tile = jnp.max(scores, axis=0, keepdims=True)              # (1, B)
    m_old = m_c_ref[...]
    m_new = jnp.maximum(m_old, m_tile)
    l_c_ref[...] = (l_c_ref[...] * jnp.exp(m_old - m_new)
                    + jnp.sum(jnp.exp(scores - m_new), axis=0, keepdims=True))
    m_c_ref[...] = m_new

    @pl.when(i == n_tiles - 1)
    def _finalize():
        lse_c = m_c_ref[...] + jnp.log(l_c_ref[...])             # (1, B)
        sum_lse_c = jnp.sum(lse_c, axis=1, keepdims=True)        # (1, 1)
        sum_lse_r = acc_r_ref[...]
        sum_diag = acc_d_ref[...]
        loss = ((sum_lse_r - sum_diag) + (sum_lse_c - sum_diag)) * (0.5 / b)
        out_ref[...] = loss


def _pick_tile_m(b):
    """Row-tile size: a multiple of 8 dividing B, sized so the ~3 live f32
    (tile_m, B) temporaries stay well inside VMEM even on v7x (64 MiB)."""
    if b <= 256:
        return b
    budget = 24 * 1024 * 1024
    t = budget // (3 * 4 * b)
    t = max(8, min(512, (t // 8) * 8))
    while t > 8 and b % t != 0:
        t -= 8
    if b % t != 0:
        # B not divisible by 8: fall back to a single full-height tile
        # (correct but untiled; tail masking would be needed to tile this case).
        return b
    return t


def infonce_loss(im, s, temperature=0.1, *, tile_m=None):
    """Pallas TPU implementation of InfoNCE.forward.

    `temperature` may be a Python float (learnable=False) or a traced JAX
    scalar (learnable=True); it reaches the kernel through SMEM scalar
    prefetch either way. Inputs are used in their given dtype (bf16 stays
    bf16 on the MXU); all post-matmul softmax math is f32.
    """
    assert im.ndim == 2 and s.ndim == 2 and im.shape == s.shape
    assert im.dtype == s.dtype
    b, d = im.shape

    if tile_m is None:
        tile_m = _pick_tile_m(b)
    assert b % tile_m == 0 and (tile_m % 8 == 0 or tile_m == b), (b, tile_m)
    n_tiles = b // tile_m

    temp = jnp.asarray(temperature, dtype=jnp.float32).reshape((1,))

    itemsize = jnp.dtype(im.dtype).itemsize
    vmem_est = (b * d * itemsize                 # s fully resident
                + 2 * tile_m * d * itemsize      # double-buffered im tiles
                + 4 * tile_m * b * 4             # scores tile + softmax temporaries
                + 2 * b * 4 + 4096)              # column scratch + scalar accumulators
    vmem_limit = int(min(max(2 * vmem_est, 16 * 2**20), 48 * 2**20))

    grid_spec = pltpu.PrefetchScalarGridSpec(
        num_scalar_prefetch=1,                   # temperature -> SMEM
        grid=(n_tiles,),
        in_specs=[
            pl.BlockSpec((tile_m, d), lambda i, temp_ref: (i, 0)),   # im row tile
            pl.BlockSpec((b, d), lambda i, temp_ref: (0, 0)),        # s, resident
        ],
        out_specs=pl.BlockSpec((1, 1), lambda i, temp_ref: (0, 0)),
        scratch_shapes=[
            pltpu.VMEM((1, b), jnp.float32),     # running column max
            pltpu.VMEM((1, b), jnp.float32),     # running column exp-sum
            pltpu.VMEM((1, 1), jnp.float32),     # sum of row logsumexp
            pltpu.VMEM((1, 1), jnp.float32),     # sum of diagonal logits
        ],
    )

    out = pl.pallas_call(
        _infonce_kernel,
        out_shape=jax.ShapeDtypeStruct((1, 1), jnp.float32),
        grid_spec=grid_spec,
        compiler_params=pltpu.CompilerParams(
            # The online column-LSE carries state across row tiles, so the grid
            # axis must stay sequential ("arbitrary").  Splitting it across
            # v7x's two TensorCores would need per-core accumulators plus a
            # combine step.
            dimension_semantics=("arbitrary",),
            vmem_limit_bytes=vmem_limit,
        ),
        cost_estimate=pl.CostEstimate(
            flops=2 * b * b * d + 2 * b * d,
            transcendentals=2 * b * b,
            bytes_accessed=2 * b * d * itemsize + temp.size * 4 + 4,
        ),
    )(temp, im, s)
    return out[0, 0]


def _infonce_ref(im, s, temperature=0.1):
    """Plain-JAX reference matching the PyTorch semantics."""
    scores = (im @ s.T) / temperature
    lse_r = jax.nn.logsumexp(scores, axis=1)
    lse_c = jax.nn.logsumexp(scores, axis=0)
    diag = jnp.diagonal(scores)
    loss_im = jnp.mean(lse_r - diag)
    loss_sen = jnp.mean(lse_c - diag)
    return (loss_im + loss_sen) / 2.0


if __name__ == "__main__":
    B, D = 16, 32
    key = jax.random.PRNGKey(0)
    k_im, k_s = jax.random.split(key)
    im = jax.random.normal(k_im, (B, D), dtype=jnp.float32)
    s = jax.random.normal(k_s, (B, D), dtype=jnp.float32)

    ref = _infonce_ref(im, s, temperature=0.1)

    # Multi-tile path: a grid of 2 row tiles exercises the online column-LSE.
    loss_tiled = jax.block_until_ready(infonce_loss(im, s, temperature=0.1, tile_m=8))
    assert jnp.allclose(loss_tiled, ref, rtol=2e-2, atol=1e-3), (loss_tiled, ref)

    # Default (single-tile) path.
    loss_full = jax.block_until_ready(infonce_loss(im, s, temperature=0.1))
    assert jnp.allclose(loss_full, ref, rtol=2e-2, atol=1e-3), (loss_full, ref)

    # bf16 inputs flow through natively (bf16 MXU matmul, f32 accumulation);
    # compare against the f32 reference evaluated on the bf16-cast operands.
    im_bf, s_bf = im.astype(jnp.bfloat16), s.astype(jnp.bfloat16)
    ref_bf = _infonce_ref(im_bf.astype(jnp.float32), s_bf.astype(jnp.float32), 0.1)
    loss_bf = jax.block_until_ready(infonce_loss(im_bf, s_bf, temperature=0.1, tile_m=8))
    assert jnp.allclose(loss_bf, ref_bf, rtol=5e-2, atol=5e-2), (loss_bf, ref_bf)

    print("KERNEL_OK")
</pallas_src>

<mosaic_0001>
module attributes {stable_mosaic.version = 11 : i64} {
  func.func @_infonce_kernel(%arg0: i32, %arg1: memref<1xf32, #tpu.memory_space<smem>>, %arg2: memref<8x32xf32, #tpu.memory_space<vmem>>, %arg3: memref<16x32xf32, #tpu.memory_space<vmem>>, %arg4: memref<1x1xf32, #tpu.memory_space<vmem>>, %arg5: memref<1x16xf32, #tpu.memory_space<vmem>>, %arg6: memref<1x16xf32, #tpu.memory_space<vmem>>, %arg7: memref<1x1xf32, #tpu.memory_space<vmem>>, %arg8: memref<1x1xf32, #tpu.memory_space<vmem>>) attributes {dimension_semantics = [#tpu.dimension_semantics<arbitrary>], iteration_bounds = array<i64: 2>, scalar_prefetch = 1 : i64, scratch_operands = 4 : i64, tpu.core_type = #tpu.core_type<tc>, window_params = [{transform_indices = @transform_0, window_bounds = array<i64: 8, 32>}, {pipeline_mode = #tpu.pipeline_mode<synchronous>, transform_indices = @transform_1, window_bounds = array<i64: 16, 32>}, {pipeline_mode = #tpu.pipeline_mode<synchronous>, transform_indices = @transform_2, window_bounds = array<i64: 1, 1>}]} {
    %c0_i32 = arith.constant 0 : i32
    %0 = arith.cmpi eq, %arg0, %c0_i32 : i32
    %1 = arith.extui %0 : i1 to i32
    %c0_i32_0 = arith.constant 0 : i32
    %2 = arith.cmpi ne, %1, %c0_i32_0 : i32
    scf.if %2 {
      %cst_31 = arith.constant 0xFF800000 : f32
      %55 = vector.broadcast %cst_31 : f32 to vector<1x16xf32>
      %c0_32 = arith.constant 0 : index
      %c0_33 = arith.constant 0 : index
      %56 = vector.load %arg5[%c0_32, %c0_33] : memref<1x16xf32, #tpu.memory_space<vmem>>, vector<1x16xf32>
      tpu.vector_store %arg5[%c0_32, %c0_33], %55 {strides = array<i32>} : memref<1x16xf32, #tpu.memory_space<vmem>>, vector<1x16xf32>,
      %cst_34 = arith.constant 0.000000e+00 : f32
      %57 = vector.broadcast %cst_34 : f32 to vector<1x16xf32>
      %c0_35 = arith.constant 0 : index
      %c0_36 = arith.constant 0 : index
      %58 = vector.load %arg6[%c0_35, %c0_36] : memref<1x16xf32, #tpu.memory_space<vmem>>, vector<1x16xf32>
      tpu.vector_store %arg6[%c0_35, %c0_36], %57 {strides = array<i32>} : memref<1x16xf32, #tpu.memory_space<vmem>>, vector<1x16xf32>,
      %cst_37 = arith.constant 0.000000e+00 : f32
      %59 = vector.broadcast %cst_37 : f32 to vector<1x1xf32>
      %c0_38 = arith.constant 0 : index
      %c0_39 = arith.constant 0 : index
      %60 = vector.load %arg7[%c0_38, %c0_39] : memref<1x1xf32, #tpu.memory_space<vmem>>, vector<1x1xf32>
      tpu.vector_store %arg7[%c0_38, %c0_39], %59 {strides = array<i32>} : memref<1x1xf32, #tpu.memory_space<vmem>>, vector<1x1xf32>,
      %cst_40 = arith.constant 0.000000e+00 : f32
      %61 = vector.broadcast %cst_40 : f32 to vector<1x1xf32>
      %c0_41 = arith.constant 0 : index
      %c0_42 = arith.constant 0 : index
      %62 = vector.load %arg8[%c0_41, %c0_42] : memref<1x1xf32, #tpu.memory_space<vmem>>, vector<1x1xf32>
      tpu.vector_store %arg8[%c0_41, %c0_42], %61 {strides = array<i32>} : memref<1x1xf32, #tpu.memory_space<vmem>>, vector<1x1xf32>,
    } else {
    }
    %c0 = arith.constant 0 : index
    %3 = memref.load %arg1[%c0] : memref<1xf32, #tpu.memory_space<smem>>
    %cst = arith.constant 1.000000e+00 : f32
    %4 = arith.divf %cst, %3 : f32
    %c0_1 = arith.constant 0 : index
    %c0_2 = arith.constant 0 : index
    %5 = vector.load %arg2[%c0_1, %c0_2] : memref<8x32xf32, #tpu.memory_space<vmem>>, vector<8x32xf32>
    %6 = vector.broadcast %4 : f32 to vector<8x32xf32>
    %7 = arith.mulf %5, %6 : vector<8x32xf32>
    %c0_3 = arith.constant 0 : index
    %c0_4 = arith.constant 0 : index
    %8 = vector.load %arg3[%c0_3, %c0_4] : memref<16x32xf32, #tpu.memory_space<vmem>>, vector<16x32xf32>
    %cst_5 = arith.constant dense<0.000000e+00> : vector<8x16xf32>
    %9 = tpu.matmul %7, %8, %cst_5 {dimension_numbers = #tpu.dot_dimension_numbers<[1], [1], [0], [0], [0, 0, 1, 0], [], []>} : vector<8x32xf32>, vector<16x32xf32>, vector<8x16xf32> -> vector<8x16xf32>
    %c8_i32 = arith.constant 8 : i32
    %10 = arith.muli %arg0, %c8_i32 : i32
    %11 = tpu.assume_multiple %10, 8 : i32
    %12 = arith.index_cast %11 : i32 to index
    %c0_6 = arith.constant 0 : index
    %13 = vector.load %arg3[%12, %c0_6] : memref<16x32xf32, #tpu.memory_space<vmem>>, vector<8x32xf32>
    %14 = arith.mulf %7, %13 : vector<8x32xf32>
    %cst_7 = arith.constant dense<0.000000e+00> : vector<8xf32>
    %15 = vector.multi_reduction <add>, %14, %cst_7 [1] : vector<8x32xf32> to vector<8xf32>
    %16 = vector.shape_cast %15 : vector<8xf32> to vector<8x1xf32>
    %cst_8 = arith.constant dense<0xFF800000> : vector<8xf32>
    %17 = vector.multi_reduction <maximumf>, %9, %cst_8 [1] : vector<8x16xf32> to vector<8xf32>
    %18 = vector.shape_cast %17 : vector<8xf32> to vector<8x1xf32>
    %19 = vector.broadcast %18 : vector<8x1xf32> to vector<8x16xf32>
    %20 = arith.subf %9, %19 : vector<8x16xf32>
    %21 = math.exp %20 : vector<8x16xf32>
    %cst_9 = arith.constant dense<0.000000e+00> : vector<8xf32>
    %22 = vector.multi_reduction <add>, %21, %cst_9 [1] : vector<8x16xf32> to vector<8xf32>
    %23 = vector.shape_cast %22 : vector<8xf32> to vector<8x1xf32>
    %24 = math.log %23 : vector<8x1xf32>
    %25 = arith.addf %18, %24 : vector<8x1xf32>
    %c0_10 = arith.constant 0 : index
    %c0_11 = arith.constant 0 : index
    %26 = vector.load %arg7[%c0_10, %c0_11] : memref<1x1xf32, #tpu.memory_space<vmem>>, vector<1x1xf32>
    %cst_12 = arith.constant dense<0.000000e+00> : vector<1xf32>
    %27 = vector.multi_reduction <add>, %25, %cst_12 [0] : vector<8x1xf32> to vector<1xf32>
    %28 = vector.shape_cast %27 : vector<1xf32> to vector<1x1xf32>
    %29 = arith.addf %26, %28 : vector<1x1xf32>
    %c0_13 = arith.constant 0 : index
    %c0_14 = arith.constant 0 : index
    %30 = vector.load %arg7[%c0_13, %c0_14] : memref<1x1xf32, #tpu.memory_space<vmem>>, vector<1x1xf32>
    tpu.vector_store %arg7[%c0_13, %c0_14], %29 {strides = array<i32>} : memref<1x1xf32, #tpu.memory_space<vmem>>, vector<1x1xf32>,
    %c0_15 = arith.constant 0 : index
    %c0_16 = arith.constant 0 : index
    %31 = vector.load %arg8[%c0_15, %c0_16] : memref<1x1xf32, #tpu.memory_space<vmem>>, vector<1x1xf32>
    %cst_17 = arith.constant dense<0.000000e+00> : vector<1xf32>
    %32 = vector.multi_reduction <add>, %16, %cst_17 [0] : vector<8x1xf32> to vector<1xf32>
    %33 = vector.shape_cast %32 : vector<1xf32> to vector<1x1xf32>
    %34 = arith.addf %31, %33 : vector<1x1xf32>
    %c0_18 = arith.constant 0 : index
    %c0_19 = arith.constant 0 : index
    %35 = vector.load %arg8[%c0_18, %c0_19] : memref<1x1xf32, #tpu.memory_space<vmem>>, vector<1x1xf32>
    tpu.vector_store %arg8[%c0_18, %c0_19], %34 {strides = array<i32>} : memref<1x1xf32, #tpu.memory_space<vmem>>, vector<1x1xf32>,
    %cst_20 = arith.constant dense<0xFF800000> : vector<16xf32>
    %36 = vector.multi_reduction <maximumf>, %9, %cst_20 [0] : vector<8x16xf32> to vector<16xf32>
    %37 = vector.shape_cast %36 : vector<16xf32> to vector<1x16xf32>
    %c0_21 = arith.constant 0 : index
    %c0_22 = arith.constant 0 : index
    %38 = vector.load %arg5[%c0_21, %c0_22] : memref<1x16xf32, #tpu.memory_space<vmem>>, vector<1x16xf32>
    %39 = arith.maximumf %38, %37 : vector<1x16xf32>
    %c0_23 = arith.constant 0 : index
    %c0_24 = arith.constant 0 : index
    %40 = vector.load %arg6[%c0_23, %c0_24] : memref<1x16xf32, #tpu.memory_space<vmem>>, vector<1x16xf32>
    %41 = arith.subf %38, %39 : vector<1x16xf32>
    %42 = math.exp %41 : vector<1x16xf32>
    %43 = arith.mulf %40, %42 : vector<1x16xf32>
    %44 = vector.broadcast %39 : vector<1x16xf32> to vector<8x16xf32>
    %45 = arith.subf %9, %44 : vector<8x16xf32>
    %46 = math.exp %45 : vector<8x16xf32>
    %cst_25 = arith.constant dense<0.000000e+00> : vector<16xf32>
    %47 = vector.multi_reduction <add>, %46, %cst_25 [0] : vector<8x16xf32> to vector<16xf32>
    %48 = vector.shape_cast %47 : vector<16xf32> to vector<1x16xf32>
    %49 = arith.addf %43, %48 : vector<1x16xf32>
    %c0_26 = arith.constant 0 : index
    %c0_27 = arith.constant 0 : index
    %50 = vector.load %arg6[%c0_26, %c0_27] : memref<1x16xf32, #tpu.memory_space<vmem>>, vector<1x16xf32>
    tpu.vector_store %arg6[%c0_26, %c0_27], %49 {strides = array<i32>} : memref<1x16xf32, #tpu.memory_space<vmem>>, vector<1x16xf32>,
    %c0_28 = arith.constant 0 : index
    %c0_29 = arith.constant 0 : index
    %51 = vector.load %arg5[%c0_28, %c0_29] : memref<1x16xf32, #tpu.memory_space<vmem>>, vector<1x16xf32>
    tpu.vector_store %arg5[%c0_28, %c0_29], %39 {strides = array<i32>} : memref<1x16xf32, #tpu.memory_space<vmem>>, vector<1x16xf32>,
    %c1_i32 = arith.constant 1 : i32
    %52 = arith.cmpi eq, %arg0, %c1_i32 : i32
    %53 = arith.extui %52 : i1 to i32
    %c0_i32_30 = arith.constant 0 : i32
    %54 = arith.cmpi ne, %53, %c0_i32_30 : i32
    scf.if %54 {
      %c0_31 = arith.constant 0 : index
      %c0_32 = arith.constant 0 : index
      %55 = vector.load %arg5[%c0_31, %c0_32] : memref<1x16xf32, #tpu.memory_space<vmem>>, vector<1x16xf32>
      %c0_33 = arith.constant 0 : index
      %c0_34 = arith.constant 0 : index
      %56 = vector.load %arg6[%c0_33, %c0_34] : memref<1x16xf32, #tpu.memory_space<vmem>>, vector<1x16xf32>
      %57 = math.log %56 : vector<1x16xf32>
      %58 = arith.addf %55, %57 : vector<1x16xf32>
      %cst_35 = arith.constant dense<0.000000e+00> : vector<1xf32>
      %59 = vector.multi_reduction <add>, %58, %cst_35 [1] : vector<1x16xf32> to vector<1xf32>
      %60 = vector.shape_cast %59 : vector<1xf32> to vector<1x1xf32>
      %c0_36 = arith.constant 0 : index
      %c0_37 = arith.constant 0 : index
      %61 = vector.load %arg7[%c0_36, %c0_37] : memref<1x1xf32, #tpu.memory_space<vmem>>, vector<1x1xf32>
      %c0_38 = arith.constant 0 : index
      %c0_39 = arith.constant 0 : index
      %62 = vector.load %arg8[%c0_38, %c0_39] : memref<1x1xf32, #tpu.memory_space<vmem>>, vector<1x1xf32>
      %63 = arith.subf %61, %62 : vector<1x1xf32>
      %64 = arith.subf %60, %62 : vector<1x1xf32>
      %65 = arith.addf %63, %64 : vector<1x1xf32>
      %cst_40 = arith.constant 3.125000e-02 : f32
      %66 = vector.broadcast %cst_40 : f32 to vector<1x1xf32>
      %67 = arith.mulf %65, %66 : vector<1x1xf32>
      %c0_41 = arith.constant 0 : index
      %c0_42 = arith.constant 0 : index
      %68 = vector.load %arg4[%c0_41, %c0_42] : memref<1x1xf32, #tpu.memory_space<vmem>>, vector<1x1xf32>
      tpu.vector_store %arg4[%c0_41, %c0_42], %67 {strides = array<i32>} : memref<1x1xf32, #tpu.memory_space<vmem>>, vector<1x1xf32>,
    } else {
    }
    return
  }
  func.func @transform_0(%arg0: i32, %arg1: memref<1xf32, #tpu.memory_space<smem>>) -> (i32, i32) {
    %c0_i32 = arith.constant 0 : i32
    %c0_i32_0 = arith.constant 0 : i32
    return %arg0, %c0_i32 : i32, i32
  }
  func.func @transform_1(%arg0: i32, %arg1: memref<1xf32, #tpu.memory_space<smem>>) -> (i32, i32) {
    %c0_i32 = arith.constant 0 : i32
    %c0_i32_0 = arith.constant 0 : i32
    %c0_i32_1 = arith.constant 0 : i32
    return %c0_i32, %c0_i32_0 : i32, i32
  }
  func.func @transform_2(%arg0: i32, %arg1: memref<1xf32, #tpu.memory_space<smem>>) -> (i32, i32) {
    %c0_i32 = arith.constant 0 : i32
    %c0_i32_0 = arith.constant 0 : i32
    %c0_i32_1 = arith.constant 0 : i32
    return %c0_i32, %c0_i32_0 : i32, i32
  }
}

</mosaic_0001>

<llo_original>
// kernel: tpu_custom_call.1
$region0: #{tpu_custom_call.1}
  #allocation0 [shape = 'u32[]', space=smem, size = 0x4, offset = 0x4, fixed_abs, tag = 'smem constant byte address 0x4 - core index']
  #allocation1 [shape = 'u32[144,128]{1,0:T(1,128)}', space=vmem, size = 0x12000, scoped, tag = 'internal scratch']
  #allocation2 [shape = 'f32[1,16]{1,0:T(1,128)}', space=vmem, size = 0x200, scoped, tag = 'scratch operand']
  #allocation3 [shape = 'f32[1,16]{1,0:T(1,128)}', space=vmem, size = 0x200, scoped, tag = 'scratch operand']
  #allocation4 [shape = 'f32[1,1]{1,0:T(1,128)}', space=vmem, size = 0x200, scoped, tag = 'scratch operand']
  #allocation5 [shape = 'f32[1,1]{1,0:T(1,128)}', space=vmem, size = 0x200, scoped, tag = 'scratch operand']
  #allocation6 [shape = 's32[1]{0}', space=sflag, size = 0x4, scoped, tag = 'scoped memory for tpu_custom_call.1']
  #allocation7 [shape = 'f32[1]{0:T(128)S(6)}', space=smem, size = 0x200, scoped, tag = 'prefetched SMEM operand 0']
  %s0 = inlined_call_operand.<no memory space> [shape: f32[1], index: 0, kind: input, shape index: {}]
  %s1 = inlined_call_operand.hbm [shape: f32[16,32], index: 1, kind: input, shape index: {}]
  %s2 = inlined_call_operand.hbm [shape: f32[16,32], index: 2, kind: input, shape index: {}]
  %s3 = inlined_call_operand.hbm [shape: f32[1,1], index: 3, kind: output, shape index: {}]
  %s4 = sld [smem:[#allocation0]]
  $region57: #{tpu_custom_call.1} parent=0
    _
  %s6 = ssub.s32 1, %s4
  %s7 = scalar_select 0, %s6, %s4
  %8 = sst [smem:[#allocation7]] %s0
  $region1: #{tpu_custom_call.1} parent=0
    #allocation8 [shape = 'u8[8192]{0}', space=vmem, size = 0x2000, scoped, tag = 'input window, operand 1']
    #allocation9 [shape = 's32[2]{0}', space=sflag, size = 0x8, scoped, tag = 'scoped memory for tpu_custom_call.1']
    #allocation10 [shape = 's32[2]{0}', space=sflag, size = 0x8, scoped, tag = 'scoped memory for tpu_custom_call.1']
    #allocation11 [shape = 'u8[8192]{0}', space=vmem, size = 0x2000, scoped, tag = 'input window, operand 2, single buffered']
    #allocation12 [shape = 's32[1]{0}', space=sflag, size = 0x4, scoped, tag = 'scoped memory for tpu_custom_call.1']
    #allocation13 [shape = 'u8[512]{0}', space=vmem, size = 0x400, scoped, tag = 'output window, operand 0, single buffered']
    %9 = vsyncpa [#allocation9], 0
    %s10 = scalar_lea.sflag [#allocation9], 1
    %11 = vsyncpa %s10, 0
    %12 = vsyncpa [#allocation12], 0
    %13 = vsyncpa [#allocation10], 0
    loop: start=0, step=1, limit=4
    $region2: #{tpu_custom_call.1} parent=1 // loop_pre_header
      _
    $region3: #{tpu_custom_call.1} parent=1 // loop_header
      %s15 = sphi 0, %s19
      %p16 = scmp.ge.s32.totalorder %s15, 4
      %s25 = sphi 0, %s27
      %s28 = sphi 0, %s25
      %s29 = sphi 0, %s28
      %s45 = sphi 0, %s29
      %s49 = sphi 0, %s49
      %s51 = sphi 0, %s49
      %s52 = sphi 0, %s51
      %s66 = sphi 0, %s52
      %s70 = sphi 0, %s70
      %s72 = sphi 0, %s70
      %s73 = sphi 0, %s72
      %s87 = sphi 0, %s73
    $region4: #{tpu_custom_call.1} parent=1 // loop_header_branch
      %18 = sbr.rel (%p16) target = $region8
    $region5: #{tpu_custom_call.1} parent=1 // loop_body
      %s20 = ssub.s32 %s15, 1
      %s21 = ssub.s32 %s15, 2
      %s22 = sadd.s32 %s15, 1
      %s23 = ssub.s32 %s15, %s22
      %p24 = scmp.eq.s32.totalorder %s23, 0
      %s26 = sadd.s32 %s25, 1
      %s27 = scalar_select %p24, %s25, %s26
      %p30 = pneg %p24
      %p31 = scmp.eq.s32.totalorder %s15, 1
      %p32 = por %p30, %p31
      %p33 = scmp.ne.s32.totalorder %s25, %s28
      %p34 = scmp.eq.s32.totalorder %s15, 0
      %p35 = por %p33, %p34
      %p36 = scmp.ne.s32.totalorder %s25, %s28
      %p37 = scmp.eq.s32.totalorder %s20, 1
      %p38 = por %p36, %p37
      %p39 = scmp.ne.s32.totalorder %s28, %s29
      %p40 = scmp.eq.s32.totalorder %s20, 0
      %p41 = por %p39, %p40
      %p42 = scmp.ne.s32.totalorder %s28, %s29
      %p43 = scmp.eq.s32.totalorder %s21, 1
      %p44 = por %p42, %p43
      %p46 = scmp.ne.s32.totalorder %s29, %s45
      %p47 = scmp.eq.s32.totalorder %s21, 0
      %p48 = por %p46, %p47
      %s50 = sadd.s32 %s49, 1
      %p53 = scmp.eq.s32.totalorder %s15, 1
      %p54 = scmp.ne.s32.totalorder %s49, %s51
      %p55 = scmp.eq.s32.totalorder %s15, 0
      %p56 = por %p54, %p55
      %p57 = scmp.ne.s32.totalorder %s49, %s51
      %p58 = scmp.eq.s32.totalorder %s20, 1
      %p59 = por %p57, %p58
      %p60 = scmp.ne.s32.totalorder %s51, %s52
      %p61 = scmp.eq.s32.totalorder %s20, 0
      %p62 = por %p60, %p61
      %p63 = scmp.ne.s32.totalorder %s51, %s52
      %p64 = scmp.eq.s32.totalorder %s21, 1
      %p65 = por %p63, %p64
      %p67 = scmp.ne.s32.totalorder %s52, %s66
      %p68 = scmp.eq.s32.totalorder %s21, 0
      %p69 = por %p67, %p68
      %s71 = sadd.s32 %s70, 1
      %p74 = scmp.eq.s32.totalorder %s15, 1
      %p75 = scmp.ne.s32.totalorder %s70, %s72
      %p76 = scmp.eq.s32.totalorder %s15, 0
      %p77 = por %p75, %p76
      %p78 = scmp.ne.s32.totalorder %s70, %s72
      %p79 = scmp.eq.s32.totalorder %s20, 1
      %p80 = por %p78, %p79
      %p81 = scmp.ne.s32.totalorder %s72, %s73
      %p82 = scmp.eq.s32.totalorder %s20, 0
      %p83 = por %p81, %p82
      %p84 = scmp.ne.s32.totalorder %s72, %s73
      %p85 = scmp.eq.s32.totalorder %s21, 1
      %p86 = por %p84, %p85
      %p88 = scmp.ne.s32.totalorder %s73, %s87
      %p89 = scmp.eq.s32.totalorder %s21, 0
      %p90 = por %p88, %p89
      %p91 = scmp.le.s32.totalorder 1, %s15
      %p92 = scmp.lt.s32.totalorder %s15, 3
      %p93 = pnand %p91, %p92
      %p94 = pneg %p93
      // Predicated region
      $region9: #{tpu_custom_call.1} parent=5 // pred_check
        _
      $region10: #{tpu_custom_call.1} parent=5 // pred_check_branch
        %96 = sbr.rel (%p93) target = $region12
      $region11: #{tpu_custom_call.1} parent=5 // pred_region
        %s97 = ssub.s32 %s15, 1
        // Predicated region
        $region13: #{tpu_custom_call.1} parent=11 // pred_check
          %p98 = pneg %p62
        $region14: #{tpu_custom_call.1} parent=11 // pred_check_branch
          %100 = sbr.rel (%p98) target = $region16
        $region15: #{tpu_custom_call.1} parent=11 // pred_region
          %s102 = ssub.s32 256, 256
          %103 = vsyncadd [#allocation12], %s102
          %s104 = sshll.u32 [#allocation11], 4
          %s105 = int_to_ptr.vmem [resolvable:$true] %s104
          %110 = dma.hbm_to_vmem [thread:$0]  %s2, 256, %s105, [#allocation12], 128, 128, 8
        $region16: #{tpu_custom_call.1} parent=11 // pred_fallthru
          _
      $region12: #{tpu_custom_call.1} parent=5 // pred_fallthru
        _
      %p111 = scmp.lt.s32.totalorder %s15, 2
      // Predicated region
      $region17: #{tpu_custom_call.1} parent=5 // pred_check
        %p112 = pneg %p111
      $region18: #{tpu_custom_call.1} parent=5 // pred_check_branch
        %114 = sbr.rel (%p112) target = $region20
      $region19: #{tpu_custom_call.1} parent=5 // pred_region
        // Predicated region
        $region21: #{tpu_custom_call.1} parent=19 // pred_check
          %p115 = pneg %p35
        $region22: #{tpu_custom_call.1} parent=19 // pred_check_branch
          %117 = sbr.rel (%p115) target = $region24
        $region23: #{tpu_custom_call.1} parent=19 // pred_region
          %s118 = sand.u32 %s25, 1
          %s119 = scalar_lea.sflag [#allocation9], %s118
          %s120 = sand.u32 %s25, 1
          %s121 = smul.addr %s120, 8
          %s122 = scalar_lea.vmem [#allocation8], %s121
          %s124 = ssub.s32 128, 128
          %125 = vsyncadd %s119, %s124
          %s126 = smul.addr %s15, 128
          %s127 = scalar_lea.hbm %s1, %s126
          %s129 = sshll.u32 %s122, 4
          %s130 = int_to_ptr.vmem [resolvable:$true] %s129
          %132 = dma.hbm_to_vmem [thread:$0]  %s127, 128, %s130, %s119
        $region24: #{tpu_custom_call.1} parent=19 // pred_fallthru
          _
      $region20: #{tpu_custom_call.1} parent=5 // pred_fallthru
        _
      %p133 = scmp.le.s32.totalorder 1, %s15
      %p134 = scmp.lt.s32.totalorder %s15, 3
      %p135 = pnand %p133, %p134
      %p136 = pneg %p135
      // Predicated region
      $region25: #{tpu_custom_call.1} parent=5 // pred_check
        _
      $region26: #{tpu_custom_call.1} parent=5 // pred_check_branch
        %138 = sbr.rel (%p135) target = $region28
      $region27: #{tpu_custom_call.1} parent=5 // pred_region
        %s139 = ssub.s32 %s15, 1
        %s140 = sand.u32 %s28, 1
        %s141 = scalar_lea.sflag [#allocation9], %s140
        %s142 = sand.u32 %s28, 1
        %s143 = smul.addr %s142, 8
        %s144 = scalar_lea.vmem [#allocation8], %s143
        // Predicated region
        $region29: #{tpu_custom_call.1} parent=27 // pred_check
          %p145 = pneg %p41
        $region30: #{tpu_custom_call.1} parent=27 // pred_check_branch
          %147 = sbr.rel (%p145) target = $region32
        $region31: #{tpu_custom_call.1} parent=27 // pred_region
          %148 = dma.done %s141, 128
        $region32: #{tpu_custom_call.1} parent=27 // pred_fallthru
          _
        // Predicated region
        $region33: #{tpu_custom_call.1} parent=27 // pred_check
          %p149 = pneg %p62
        $region34: #{tpu_custom_call.1} parent=27 // pred_check_branch
          %151 = sbr.rel (%p149) target = $region36
        $region35: #{tpu_custom_call.1} parent=27 // pred_region
          %152 = dma.done [#allocation12], 256
        $region36: #{tpu_custom_call.1} parent=27 // pred_fallthru
          _
        %s153 = sand.u32 %s28, 1
        %s154 = scalar_lea.sflag [#allocation9], %s153
        %s155 = sand.u32 %s28, 1
        %s156 = smul.addr %s155, 8
        %s157 = scalar_lea.vmem [#allocation8], %s156
        %p158 = pneg %p41
        %p159 = pneg %p38
        %p160 = pneg %p62
        %p161 = pneg %p59
        %p162 = pneg %p83
        %p163 = pneg %p80
        %p164 = scmp.eq.s32.totalorder %s20, 0
        // Predicated region
        $region37: #{tpu_custom_call.1} parent=27 // pred_check
          %p165 = pneg %p164
        $region38: #{tpu_custom_call.1} parent=27 // pred_check_branch
          %167 = sbr.rel (%p165) target = $region40
        $region39: #{tpu_custom_call.1} parent=27 // pred_region
          %vm168 = vcmask 122880
          %169 = vst.msk [vmem:[#allocation2] sm:$0x1] %vm168, -inf
          %170 = vst.msk [vmem:[#allocation3] sm:$0x1] %vm168, 0.0
          %vm171 = vcmask 0
          %172 = vst.msk [vmem:[#allocation4] sm:$0x1] %vm171, 0.0
          %173 = vst.msk [vmem:[#allocation5] sm:$0x1] %vm171, 0.0
        $region40: #{tpu_custom_call.1} parent=27 // pred_fallthru
          _
        %s174 = sld [smem:[#allocation7]]
        %v175 = vstv %s174
        %v176 = vrcp.pop %v175
        %s177 = vtos %v176
        %v178 = vld [vmem:[%s144] sm:$0xff]
        %v179 = vstv %s177
        %v180 = vmul.f32 %v178, %v179
        %v181 = vld [vmem:[#allocation11] sm:$0xff]
        %v182 = vld [vmem:[#allocation11 + $0x8] sm:$0xff]
        %vm183 = vcmask 261120
        %v185 = vsel %vm183, %v180, 0
        %v188 = vsel %vm183, %v181, 0
        %v191 = vsel %vm183, %v182, 0
        %193 = vmatprep.subr.mxu0 0.0
        %194 = vmatpush1.xpose.msra.mxu0 0.0
        %195 = vmatprep.subr.mxu0 0.0
        %196 = vmatpush1.xpose.msra.mxu0 0.0
        %197 = vmatprep.subr.mxu0 0.0
        %198 = vmatpush1.xpose.msra.mxu0 0.0
        %199 = vmatprep.subr.mxu0 0.0
        %200 = vmatpush1.xpose.msra.mxu0 0.0
        %201 = vmatprep.subr.mxu0 0.0
        %202 = vmatpush1.xpose.msra.mxu0 0.0
        %203 = vmatprep.subr.mxu0 0.0
        %204 = vmatpush1.xpose.msra.mxu0 0.0
        %205 = vmatprep.subr.mxu0 0.0
        %206 = vmatpush1.xpose.msra.mxu0 0.0
        %207 = vmatprep.subr.mxu0 0.0
        %208 = vmatpush1.xpose.msra.mxu0 0.0
        %209 = vmatprep.subr.mxu0 0.0
        %210 = vmatpush1.xpose.msra.mxu0 0.0
        %211 = vmatprep.subr.mxu0 0.0
        %212 = vmatpush1.xpose.msra.mxu0 0.0
        %213 = vmatprep.subr.mxu0 0.0
        %214 = vmatpush1.xpose.msra.mxu0 0.0
        %215 = vmatprep.subr.mxu0 0.0
        %216 = vmatpush1.xpose.msra.mxu0 0.0
        %217 = vmatprep.subr.mxu0 0.0
        %218 = vmatpush1.xpose.msra.mxu0 0.0
        %219 = vmatprep.subr.mxu0 0.0
        %220 = vmatpush1.xpose.msra.mxu0 0.0
        %221 = vmatprep.subr.mxu0 0.0
        %222 = vmatpush1.xpose.msra.mxu0 %v191
        %223 = vmatprep.subr.mxu0 0.0
        %224 = vmatpush1.xpose.msra.mxu0 %v188
        %225 = vmatprep.subr.mxu0 0.0
        %226 = vmatpush2.xpose.msra.mxu0 0.0
        %227 = vmatprep.subr.mxu0 0.0
        %228 = vmatpush2.xpose.msra.mxu0 0.0
        %229 = vmatprep.subr.mxu0 0.0
        %230 = vmatpush2.xpose.msra.mxu0 0.0
        %231 = vmatprep.subr.mxu0 0.0
        %232 = vmatpush2.xpose.msra.mxu0 0.0
        %233 = vmatprep.subr.mxu0 0.0
        %234 = vmatpush2.xpose.msra.mxu0 0.0
        %235 = vmatprep.subr.mxu0 0.0
        %236 = vmatpush2.xpose.msra.mxu0 0.0
        %237 = vmatprep.subr.mxu0 0.0
        %238 = vmatpush2.xpose.msra.mxu0 0.0
        %239 = vmatprep.subr.mxu0 0.0
        %240 = vmatpush2.xpose.msra.mxu0 0.0
        %241 = vmatprep.subr.mxu0 0.0
        %242 = vmatpush2.xpose.msra.mxu0 0.0
        %243 = vmatprep.subr.mxu0 0.0
        %244 = vmatpush2.xpose.msra.mxu0 0.0
        %245 = vmatprep.subr.mxu0 0.0
        %246 = vmatpush2.xpose.msra.mxu0 0.0
        %247 = vmatprep.subr.mxu0 0.0
        %248 = vmatpush2.xpose.msra.mxu0 0.0
        %249 = vmatprep.subr.mxu0 0.0
        %250 = vmatpush2.xpose.msra.mxu0 0.0
        %251 = vmatprep.subr.mxu0 0.0
        %252 = vmatpush2.xpose.msra.mxu0 0.0
        %253 = vmatprep.subr.mxu0 0.0
        %254 = vmatpush2.xpose.msra.mxu0 0.0
        %255 = vmatprep.subr.mxu0 0.0
        %256 = vmatpush2.xpose.msra.mxu0 0.0
        %257 = vmatprep.mubr.f32.mxu0 0.0
        %258 = vmatmul.mubr.f32.gmra.mxu0 %v185
        %v259 = vpop.f32.mrf.mxu0
        %v260 = vadd.f32 0.0, %v259
        %v261 = vpop.f32.mrf.mxu0
        %262 = vdwg.mxu0
        %s263 = smul.u32 %s20, 8
        %s264 = scalar_lea.vmem [#allocation11], %s263
        %v265 = vld [vmem:[%s264] sm:$0xff]
        %v266 = vmul.f32 %v180, %v265
        %v267 = vsel %vm183, %v266, 0.0
        %268 = vadd.xlane.f32.xlu0 %v267
        %v269 = vpop.xlane.xlu0 %268
        %vm270 = vcmask 130048
        %v271 = vsel %vm270, %v260, -inf
        %272 = vmax.xlane.f32.xlu0 %v271
        %v273 = vpop.xlane.xlu0 %272
        %v274 = vsub.f32 %v260, %v273
        %v275 = vmul.f32 %v274, 1.442695
        %v276 = vpow.pop %v275
        %v277 = vsel %vm270, %v276, 0.0
        %278 = vadd.xlane.f32.xlu0 %v277
        %v279 = vpop.xlane.xlu0 %278
        %v280 = vlog2.pop %v279
        %v281 = vmul.f32 %v280, 0.6931472
        %v282 = vadd.f32 %v273, %v281
        %v283 = vld [vmem:[#allocation4] sm:$0x1]
        %v284 = vrot.slane %v282, 4
        %v285 = vadd.f32 %v282, %v284
        %v286 = vrot.slane %v285, 2
        %v287 = vadd.f32 %v285, %v286
        %v288 = vrot.slane %v287, 1
        %v289 = vadd.f32 %v287, %v288
        %v290 = vadd.f32 %v283, %v289
        %vm291 = vcmask 0
        %292 = vst.msk [vmem:[#allocation4] sm:$0x1] %vm291, %v290
        %v293 = vld [vmem:[#allocation5] sm:$0x1]
        %v294 = vrot.slane %v269, 4
        %v295 = vadd.f32 %v269, %v294
        %v296 = vrot.slane %v295, 2
        %v297 = vadd.f32 %v295, %v296
        %v298 = vrot.slane %v297, 1
        %v299 = vadd.f32 %v297, %v298
        %v300 = vadd.f32 %v293, %v299
        %301 = vst.msk [vmem:[#allocation5] sm:$0x1] %vm291, %v300
        %v302 = vrot.slane %v271, 4
        %v303 = vmax.f32 %v271, %v302
        %v304 = vrot.slane %v303, 2
        %v305 = vmax.f32 %v303, %v304
        %v306 = vrot.slane %v305, 1
        %v307 = vmax.f32 %v305, %v306
        %v308 = vld [vmem:[#allocation2] sm:$0x1]
        %v309 = vmax.f32 %v308, %v307
        %v310 = vld [vmem:[#allocation3] sm:$0x1]
        %v311 = vsub.f32 %v308, %v309
        %v312 = vmul.f32 %v311, 1.442695
        %v313 = vpow.pop %v312
        %v314 = vmul.f32 %v310, %v313
        %v316 = vlaneseq
        %v317 = vshrl.u32 %v316, 7
        %v318 = vsub.s32 0, %v317
        %v319 = vrot.slane %v309, %v318
        %v321 = vsub.f32 %v260, %v319
        %v322 = vmul.f32 %v321, 1.442695
        %v323 = vpow.pop %v322
        %v324 = vsel %vm270, %v323, 0.0
        %v325 = vrot.slane %v324, 4
        %v326 = vadd.f32 %v324, %v325
        %v327 = vrot.slane %v326, 2
        %v328 = vadd.f32 %v326, %v327
        %v329 = vrot.slane %v328, 1
        %v330 = vadd.f32 %v328, %v329
        %v331 = vadd.f32 %v314, %v330
        %vm332 = vcmask 122880
        %333 = vst.msk [vmem:[#allocation3] sm:$0x1] %vm332, %v331
        %334 = vst.msk [vmem:[#allocation2] sm:$0x1] %vm332, %v309
        %p335 = scmp.eq.s32.totalorder %s20, 1
        // Predicated region
        $region41: #{tpu_custom_call.1} parent=27 // pred_check
          %p336 = pneg %p335
        $region42: #{tpu_custom_call.1} parent=27 // pred_check_branch
          %338 = sbr.rel (%p336) target = $region44
        $region43: #{tpu_custom_call.1} parent=27 // pred_region
          %v339 = vld [vmem:[#allocation2] sm:$0x1]
          %v340 = vld [vmem:[#allocation3] sm:$0x1]
          %v341 = vlog2.pop %v340
          %v342 = vmul.f32 %v341, 0.6931472
          %v343 = vadd.f32 %v339, %v342
          %v344 = vsel %vm332, %v343, 0.0
          %345 = vadd.xlane.f32.xlu0 %v344
          %v346 = vpop.xlane.xlu0 %345
          %v347 = vld [vmem:[#allocation4] sm:$0x1]
          %v348 = vld [vmem:[#allocation5] sm:$0x1]
          %v349 = vsub.f32 %v347, %v348
          %v350 = vsub.f32 %v346, %v348
          %v351 = vadd.f32 %v349, %v350
          %v352 = vmul.f32 %v351, 0.03125
          %353 = vst.msk [vmem:[#allocation13] sm:$0x1] %vm291, %v352
        $region44: #{tpu_custom_call.1} parent=27 // pred_fallthru
          _
        // Predicated region
        $region45: #{tpu_custom_call.1} parent=27 // pred_check
          %p354 = pneg %p80
        $region46: #{tpu_custom_call.1} parent=27 // pred_check_branch
          %356 = sbr.rel (%p354) target = $region48
        $region47: #{tpu_custom_call.1} parent=27 // pred_region
          %s358 = ssub.s32 16, 16
          %359 = vsyncadd [#allocation10], %s358
          %s361 = sshll.u32 [#allocation13], 4
          %s362 = int_to_ptr.vmem [resolvable:$true] %s361
          %364 = dma.vmem_to_hbm [thread:$0]  %s362, 16, %s3, [#allocation10]
        $region48: #{tpu_custom_call.1} parent=27 // pred_fallthru
          _
        // Predicated region
        $region49: #{tpu_custom_call.1} parent=27 // pred_check
          %p365 = pneg %p80
        $region50: #{tpu_custom_call.1} parent=27 // pred_check_branch
          %367 = sbr.rel (%p365) target = $region52
        $region51: #{tpu_custom_call.1} parent=27 // pred_region
          %368 = dma.done [#allocation10], 16
        $region52: #{tpu_custom_call.1} parent=27 // pred_fallthru
          _
      $region28: #{tpu_custom_call.1} parent=5 // pred_fallthru
        _
      %p369 = scmp.le.s32.totalorder 2, %s15
      // Predicated region
      $region53: #{tpu_custom_call.1} parent=5 // pred_check
        %p370 = pneg %p369
      $region54: #{tpu_custom_call.1} parent=5 // pred_check_branch
        %372 = sbr.rel (%p370) target = $region56
      $region55: #{tpu_custom_call.1} parent=5 // pred_region
        %s373 = ssub.s32 %s15, 2
      $region56: #{tpu_custom_call.1} parent=5 // pred_fallthru
        _
    $region6: #{tpu_custom_call.1} parent=1 // loop_footer
      %s19 = sadd.s32 1, %s15
    $region7: #{tpu_custom_call.1} parent=1 // loop_footer_branch
      %14 = sbr.rel target = $region3
    $region8: #{tpu_custom_call.1} parent=1 // loop_exit
      _
    %374 = vsyncpa [#allocation9], 1
    %s375 = scalar_lea.sflag [#allocation9], 1
    %376 = vsyncpa %s375, 1
    %377 = vsyncpa [#allocation12], 1
    %378 = vsyncpa [#allocation10], 1
    %s379 = scalar_lea.sflag [#allocation10], 1
    %380 = vsyncpa %s379, 1

</llo_original>
